<compile_context>
chip_gen: v7x
topology: tpu7x:2x2x1
jax: 0.10.0
libtpu: 0.0.40
codegen_flags: <defaults>
</compile_context>

<pallas_src>
import jax
import jax.numpy as jnp
from jax.experimental import pallas as pl
from jax.experimental.pallas import tpu as pltpu


def value_net_kernel(params_ref,   # SMEM (C+2,) f32: [w0..wC-1 (BN-folded), conv bias (BN-folded), fc2_b]
                     x_ref,        # VMEM (TB, C*HW) f32  (contiguous NCHW reshape, batch tile)
                     fc1_w_ref,    # VMEM (HW, HP)   f32  (hidden zero-padded to HP lanes)
                     fc_bw_ref,    # VMEM (2, HP)    f32  (row 0: fc1_b, row 1: fc2_w)
                     out_ref):     # VMEM (TB, 1)    f32
    hw = fc1_w_ref.shape[0]
    c_in = x_ref.shape[1] // hw

    # Hoist the SMEM scalar reads out of the unrolled FMA chain.
    w = [params_ref[c] for c in range(c_in)]
    conv_b = params_ref[c_in]
    fc2_b = params_ref[c_in + 1]

    # 1x1 conv (+ folded BN) as an unrolled FMA chain over lane-aligned channel
    # slices (HW is a multiple of 128 here, so each slice needs no relayout).
    y = x_ref[:, 0:hw] * w[0]
    for c in range(1, c_in):
        y = y + x_ref[:, c * hw:(c + 1) * hw] * w[c]
    y = jnp.maximum(y + conv_b, 0.0)                       # (TB, HW)

    # fc1 + relu on the MXU; hidden dim padded to HP lanes -> lane-dense h.
    h = jnp.dot(y, fc1_w_ref[...], preferred_element_type=jnp.float32)
    h = jnp.maximum(h + fc_bw_ref[0:1, :], 0.0)            # (TB, HP)

    # fc2 (HP -> 1) as a lane reduce on the VPU/XLU; padded lanes are exactly 0.
    o = jnp.sum(h * fc_bw_ref[1:2, :], axis=-1, keepdims=True) + fc2_b
    out_ref[...] = jnp.tanh(o)


def value_network_forward(x_nchw, conv_w, conv_b, bn_gamma, bn_beta, bn_mean,
                          bn_var, fc1_w, fc1_b, fc2_w, fc2_b, eps=1e-5,
                          block_b=1024):
    """x_nchw: (B, C, H, W) float32. Returns (B, 1) float32."""
    B, C, H, W = x_nchw.shape
    HW = H * W
    CHW = C * HW
    Hd = fc1_w.shape[1]
    HP = ((Hd + 127) // 128) * 128        # hidden padded to one lane-dense tile
    f32 = jnp.float32

    def rup(v, m):
        return (v + m - 1) // m * m

    def scal(v):
        return jnp.asarray(v, f32).reshape(-1)[0]

    # Fold eval-mode BatchNorm into the conv weight/bias (zero numeric change).
    bn_scale = scal(bn_gamma) / jnp.sqrt(scal(bn_var) + eps)
    bn_shift = scal(bn_beta) - scal(bn_mean) * bn_scale
    w_fold = conv_w.astype(f32).reshape(C) * bn_scale            # (C,)
    b_fold = scal(conv_b) * bn_scale + bn_shift                  # ()

    # Scalars for the kernel, all in SMEM: [w_fold..., b_fold, fc2_b].
    params = jnp.concatenate(
        [w_fold, b_fold[None], scal(fc2_b)[None]]).astype(f32)   # (C+2,)

    # x: free contiguous reshape of NCHW — no transpose, no padding copies.
    x_k = x_nchw.astype(f32).reshape(B, CHW)

    # Batch tiling: TB rows per grid step (multiple of 8); ragged last block is
    # handled by Pallas (OOB reads only feed output rows that out[:B] drops).
    TB = min(block_b, rup(B, 8))
    if B >= 16 and pl.cdiv(B, TB) < 2:
        # v7x megacore: guarantee >= 2 grid steps so the "parallel" batch axis
        # can shard across both TensorCores.
        TB = rup(pl.cdiv(B, 2), 8)
    grid_b = pl.cdiv(B, TB)

    # Zero-pad the hidden dim (padded lanes stay 0 through relu and contribute
    # nothing to fc2).  Pack fc1_b / fc2_w into one small resident operand.
    fc1_w_p = jnp.zeros((HW, HP), f32).at[:, :Hd].set(fc1_w.astype(f32))
    fc_bw = jnp.zeros((2, HP), f32)
    fc_bw = fc_bw.at[0, :Hd].set(fc1_b.astype(f32).reshape(Hd))
    fc_bw = fc_bw.at[1, :Hd].set(fc2_w.astype(f32).reshape(Hd))

    cost = pl.CostEstimate(
        flops=2 * B * (CHW + HW * HP + HP),
        transcendentals=B,
        bytes_accessed=B * CHW * 4 + HW * HP * 4 + 2 * HP * 4 + B * 4)

    out = pl.pallas_call(
        value_net_kernel,
        out_shape=jax.ShapeDtypeStruct((grid_b * TB, 1), f32),
        grid_spec=pltpu.PrefetchScalarGridSpec(
            num_scalar_prefetch=0,
            grid=(grid_b,),
            in_specs=[
                pl.BlockSpec(memory_space=pltpu.MemorySpace.SMEM),  # params
                pl.BlockSpec((TB, CHW), lambda i: (i, 0)),          # x (batch tile)
                pl.BlockSpec((HW, HP), lambda i: (0, 0)),           # fc1_w (resident)
                pl.BlockSpec((2, HP), lambda i: (0, 0)),            # fc1_b / fc2_w (resident)
            ],
            out_specs=pl.BlockSpec((TB, 1), lambda i: (i, 0)),
        ),
        compiler_params=pltpu.CompilerParams(
            dimension_semantics=("parallel",),
            vmem_limit_bytes=32 * 1024 * 1024),
        cost_estimate=cost,
    )(params, x_k, fc1_w_p, fc_bw)
    return out[:B]


def reference_forward(x_nchw, conv_w, conv_b, bn_gamma, bn_beta, bn_mean,
                      bn_var, fc1_w, fc1_b, fc2_w, fc2_b, eps=1e-5):
    B, C, H, W = x_nchw.shape
    y = jnp.einsum('bchw,c->bhw', x_nchw, conv_w) + conv_b           # 1x1 conv
    y = (y - bn_mean) / jnp.sqrt(bn_var + eps) * bn_gamma + bn_beta  # BN (eval)
    y = jax.nn.relu(y).reshape(B, H * W)
    h = jax.nn.relu(y @ fc1_w + fc1_b)
    return jnp.tanh(h @ fc2_w + fc2_b)


if __name__ == "__main__":
    # Small shapes consistent with the module: B=2, C=4, H=W=16, hidden=32.
    B, C, H, W, HIDDEN = 2, 4, 16, 16, 32
    HW = H * W

    key = jax.random.PRNGKey(0)
    keys = jax.random.split(key, 8)

    x = jax.random.normal(keys[0], (B, C, H, W), dtype=jnp.float32)

    # Deterministic parameter init (synthetic weights, not a checkpoint).
    conv_w = jax.random.normal(keys[1], (C,), dtype=jnp.float32) * 0.1   # Conv2d(C,1,1) weight
    conv_b = jax.random.normal(keys[2], (1,), dtype=jnp.float32) * 0.1
    bn_gamma = jnp.float32(1.2)
    bn_beta = jnp.float32(0.1)
    bn_mean = jnp.float32(0.05)
    bn_var = jnp.float32(0.9)
    fc1_w = jax.random.normal(keys[3], (HW, HIDDEN), dtype=jnp.float32) * 0.05
    fc1_b = jax.random.normal(keys[4], (HIDDEN,), dtype=jnp.float32) * 0.05
    fc2_w = jax.random.normal(keys[5], (HIDDEN, 1), dtype=jnp.float32) * 0.05
    fc2_b = jax.random.normal(keys[6], (1,), dtype=jnp.float32) * 0.05

    out = value_network_forward(x, conv_w, conv_b, bn_gamma, bn_beta, bn_mean,
                                bn_var, fc1_w, fc1_b, fc2_w, fc2_b)
    out = jax.block_until_ready(out)

    ref = reference_forward(x, conv_w, conv_b, bn_gamma, bn_beta, bn_mean,
                            bn_var, fc1_w, fc1_b, fc2_w, fc2_b)
    ref = jax.block_until_ready(ref)

    assert out.shape == (B, 1), out.shape
    assert jnp.allclose(out, ref, atol=1e-5, rtol=1e-5), (out, ref)
    print("KERNEL_OK")
</pallas_src>

<mosaic_0001>
module attributes {stable_mosaic.version = 11 : i64} {
  func.func @value_net_kernel(%arg0: i32, %arg1: memref<6xf32, #tpu.memory_space<smem>>, %arg2: memref<8x1024xf32, #tpu.memory_space<vmem>>, %arg3: memref<256x128xf32, #tpu.memory_space<vmem>>, %arg4: memref<2x128xf32, #tpu.memory_space<vmem>>, %arg5: memref<8x1xf32, #tpu.memory_space<vmem>>) attributes {dimension_semantics = [#tpu.dimension_semantics<parallel>], iteration_bounds = array<i64: 1>, scalar_prefetch = 0 : i64, scratch_operands = 0 : i64, tpu.core_type = #tpu.core_type<tc>, window_params = [{transform_indices = @transform_0, window_bounds = array<i64: 6>}, {transform_indices = @transform_1, window_bounds = array<i64: 8, 1024>}, {pipeline_mode = #tpu.pipeline_mode<synchronous>, transform_indices = @transform_2, window_bounds = array<i64: 256, 128>}, {pipeline_mode = #tpu.pipeline_mode<synchronous>, transform_indices = @transform_3, window_bounds = array<i64: 2, 128>}, {transform_indices = @transform_4, window_bounds = array<i64: 8, 1>}]} {
    %c0 = arith.constant 0 : index
    %0 = memref.load %arg1[%c0] : memref<6xf32, #tpu.memory_space<smem>>
    %c1 = arith.constant 1 : index
    %1 = memref.load %arg1[%c1] : memref<6xf32, #tpu.memory_space<smem>>
    %c2 = arith.constant 2 : index
    %2 = memref.load %arg1[%c2] : memref<6xf32, #tpu.memory_space<smem>>
    %c3 = arith.constant 3 : index
    %3 = memref.load %arg1[%c3] : memref<6xf32, #tpu.memory_space<smem>>
    %c4 = arith.constant 4 : index
    %4 = memref.load %arg1[%c4] : memref<6xf32, #tpu.memory_space<smem>>
    %c5 = arith.constant 5 : index
    %5 = memref.load %arg1[%c5] : memref<6xf32, #tpu.memory_space<smem>>
    %c0_0 = arith.constant 0 : index
    %c0_1 = arith.constant 0 : index
    %6 = vector.load %arg2[%c0_0, %c0_1] : memref<8x1024xf32, #tpu.memory_space<vmem>>, vector<8x256xf32>
    %7 = vector.broadcast %0 : f32 to vector<8x256xf32>
    %8 = arith.mulf %6, %7 : vector<8x256xf32>
    %c0_2 = arith.constant 0 : index
    %c256 = arith.constant 256 : index
    %9 = vector.load %arg2[%c0_2, %c256] : memref<8x1024xf32, #tpu.memory_space<vmem>>, vector<8x256xf32>
    %10 = vector.broadcast %1 : f32 to vector<8x256xf32>
    %11 = arith.mulf %9, %10 : vector<8x256xf32>
    %12 = arith.addf %8, %11 : vector<8x256xf32>
    %c0_3 = arith.constant 0 : index
    %c512 = arith.constant 512 : index
    %13 = vector.load %arg2[%c0_3, %c512] : memref<8x1024xf32, #tpu.memory_space<vmem>>, vector<8x256xf32>
    %14 = vector.broadcast %2 : f32 to vector<8x256xf32>
    %15 = arith.mulf %13, %14 : vector<8x256xf32>
    %16 = arith.addf %12, %15 : vector<8x256xf32>
    %c0_4 = arith.constant 0 : index
    %c768 = arith.constant 768 : index
    %17 = vector.load %arg2[%c0_4, %c768] : memref<8x1024xf32, #tpu.memory_space<vmem>>, vector<8x256xf32>
    %18 = vector.broadcast %3 : f32 to vector<8x256xf32>
    %19 = arith.mulf %17, %18 : vector<8x256xf32>
    %20 = arith.addf %16, %19 : vector<8x256xf32>
    %21 = vector.broadcast %4 : f32 to vector<8x256xf32>
    %22 = arith.addf %20, %21 : vector<8x256xf32>
    %cst = arith.constant 0.000000e+00 : f32
    %23 = vector.broadcast %cst : f32 to vector<8x256xf32>
    %24 = arith.maximumf %22, %23 : vector<8x256xf32>
    %c0_5 = arith.constant 0 : index
    %c0_6 = arith.constant 0 : index
    %25 = vector.load %arg3[%c0_5, %c0_6] : memref<256x128xf32, #tpu.memory_space<vmem>>, vector<256x128xf32>
    %cst_7 = arith.constant dense<0.000000e+00> : vector<8x128xf32>
    %26 = tpu.matmul %24, %25, %cst_7 {dimension_numbers = #tpu.dot_dimension_numbers<[1], [0], [0], [1], [0, 0, 1, 1], [], []>} : vector<8x256xf32>, vector<256x128xf32>, vector<8x128xf32> -> vector<8x128xf32>
    %c0_8 = arith.constant 0 : index
    %c0_9 = arith.constant 0 : index
    %27 = vector.load %arg4[%c0_8, %c0_9] : memref<2x128xf32, #tpu.memory_space<vmem>>, vector<1x128xf32>
    %28 = vector.broadcast %27 : vector<1x128xf32> to vector<8x128xf32>
    %29 = arith.addf %26, %28 : vector<8x128xf32>
    %cst_10 = arith.constant 0.000000e+00 : f32
    %30 = vector.broadcast %cst_10 : f32 to vector<8x128xf32>
    %31 = arith.maximumf %29, %30 : vector<8x128xf32>
    %c1_11 = arith.constant 1 : index
    %c0_12 = arith.constant 0 : index
    %32 = vector.load %arg4[%c1_11, %c0_12] : memref<2x128xf32, #tpu.memory_space<vmem>>, vector<1x128xf32>
    %33 = vector.broadcast %32 : vector<1x128xf32> to vector<8x128xf32>
    %34 = arith.mulf %31, %33 : vector<8x128xf32>
    %cst_13 = arith.constant dense<0.000000e+00> : vector<8xf32>
    %35 = vector.multi_reduction <add>, %34, %cst_13 [1] : vector<8x128xf32> to vector<8xf32>
    %36 = vector.shape_cast %35 : vector<8xf32> to vector<8x1xf32>
    %37 = vector.broadcast %5 : f32 to vector<8x1xf32>
    %38 = arith.addf %36, %37 : vector<8x1xf32>
    %39 = math.tanh %38 : vector<8x1xf32>
    %c0_14 = arith.constant 0 : index
    %c0_15 = arith.constant 0 : index
    %40 = vector.load %arg5[%c0_14, %c0_15] : memref<8x1xf32, #tpu.memory_space<vmem>>, vector<8x1xf32>
    tpu.vector_store %arg5[%c0_14, %c0_15], %39 {strides = array<i32>} : memref<8x1xf32, #tpu.memory_space<vmem>>, vector<8x1xf32>,
    return
  }
  func.func @transform_0(%arg0: i32) -> i32 {
    %c0_i32 = arith.constant 0 : i32
    %c0_i32_0 = arith.constant 0 : i32
    return %c0_i32 : i32
  }
  func.func @transform_1(%arg0: i32) -> (i32, i32) {
    %c0_i32 = arith.constant 0 : i32
    %c0_i32_0 = arith.constant 0 : i32
    return %arg0, %c0_i32 : i32, i32
  }
  func.func @transform_2(%arg0: i32) -> (i32, i32) {
    %c0_i32 = arith.constant 0 : i32
    %c0_i32_0 = arith.constant 0 : i32
    %c0_i32_1 = arith.constant 0 : i32
    return %c0_i32, %c0_i32_0 : i32, i32
  }
  func.func @transform_3(%arg0: i32) -> (i32, i32) {
    %c0_i32 = arith.constant 0 : i32
    %c0_i32_0 = arith.constant 0 : i32
    %c0_i32_1 = arith.constant 0 : i32
    return %c0_i32, %c0_i32_0 : i32, i32
  }
  func.func @transform_4(%arg0: i32) -> (i32, i32) {
    %c0_i32 = arith.constant 0 : i32
    %c0_i32_0 = arith.constant 0 : i32
    return %arg0, %c0_i32 : i32, i32
  }
}

</mosaic_0001>

<llo_original>
// kernel: tpu_custom_call.1
$region0: #{tpu_custom_call.1}
  #allocation0 [shape = 'u32[]', space=smem, size = 0x4, offset = 0x4, fixed_abs, tag = 'smem constant byte address 0x4 - core index']
  #allocation1 [shape = 'u32[144,128]{1,0:T(1,128)}', space=vmem, size = 0x12000, scoped, tag = 'internal scratch']
  %s0 = inlined_call_operand.hbm [shape: f32[6], index: 0, kind: input, shape index: {}]
  %s1 = inlined_call_operand.hbm [shape: f32[2,1024], index: 1, kind: input, shape index: {}]
  %s2 = inlined_call_operand.hbm [shape: f32[256,128], index: 2, kind: input, shape index: {}]
  %s3 = inlined_call_operand.vmem [shape: f32[2,128], index: 3, kind: input, shape index: {}]
  %s4 = inlined_call_operand.vmem [shape: f32[8,1], index: 4, kind: output, shape index: {}]
  %s5 = sld [smem:[#allocation0]]
  $region38: #{tpu_custom_call.1} parent=0
    _
  %s7 = ssub.s32 1, %s5
  %s8 = scalar_select 0, %s7, %s5
  $region1: #{tpu_custom_call.1} parent=0
    #allocation2 [shape = 'u8[512]{0}', space=smem, size = 0x200, scoped, tag = 'input window, operand 0, single buffered']
    #allocation3 [shape = 's32[1]{0}', space=sflag, size = 0x4, scoped, tag = 'scoped memory for tpu_custom_call.1']
    #allocation4 [shape = 's32[1]{0}', space=sflag, size = 0x4, scoped, tag = 'scoped memory for tpu_custom_call.1']
    #allocation5 [shape = 'u8[32768]{0}', space=vmem, size = 0x8000, scoped, tag = 'input window, operand 1, single buffered']
    #allocation6 [shape = 'u8[131072]{0}', space=vmem, size = 0x20000, scoped, tag = 'input window, operand 2, single buffered']
    #allocation7 [shape = 's32[1]{0}', space=sflag, size = 0x4, scoped, tag = 'scoped memory for tpu_custom_call.1']
    %9 = vsyncpa [#allocation4], 0
    %10 = vsyncpa [#allocation3], 0
    %11 = vsyncpa [#allocation7], 0
    // Predicated region
    $region2: #{tpu_custom_call.1} parent=1 // pred_check
      _
    $region3: #{tpu_custom_call.1} parent=1 // pred_check_branch
      %13 = sbr.rel (0) target = $region5
    $region4: #{tpu_custom_call.1} parent=1 // pred_region
      %s15 = ssub.s32 16, 16
      %16 = vsyncadd [#allocation4], %s15
      %19 = dma.hbm_to_smem %s0, 16, [#allocation2], [#allocation4]
    $region5: #{tpu_custom_call.1} parent=1 // pred_fallthru
      _
    // Predicated region
    $region6: #{tpu_custom_call.1} parent=1 // pred_check
      _
    $region7: #{tpu_custom_call.1} parent=1 // pred_check_branch
      %21 = sbr.rel (0) target = $region9
    $region8: #{tpu_custom_call.1} parent=1 // pred_region
      %s23 = ssub.s32 1024, 256
      %24 = vsyncadd [#allocation3], %s23
      %s25 = sshll.u32 [#allocation5], 4
      %s26 = int_to_ptr.vmem [resolvable:$true] %s25
      %31 = dma.hbm_to_vmem [thread:$0]  %s1, 256, %s26, [#allocation3], 256, 256, 16
    $region9: #{tpu_custom_call.1} parent=1 // pred_fallthru
      _
    // Predicated region
    $region10: #{tpu_custom_call.1} parent=1 // pred_check
      _
    $region11: #{tpu_custom_call.1} parent=1 // pred_check_branch
      %33 = sbr.rel (0) target = $region13
    $region12: #{tpu_custom_call.1} parent=1 // pred_region
      %s35 = ssub.s32 4096, 4096
      %36 = vsyncadd [#allocation7], %s35
      %s37 = sshll.u32 [#allocation6], 4
      %s38 = int_to_ptr.vmem [resolvable:$true] %s37
      %43 = dma.hbm_to_vmem [thread:$0]  %s2, 4096, %s38, [#allocation7], 128, 128, 8
    $region13: #{tpu_custom_call.1} parent=1 // pred_fallthru
      _
    // Predicated region
    $region14: #{tpu_custom_call.1} parent=1 // pred_check
      _
    $region15: #{tpu_custom_call.1} parent=1 // pred_check_branch
      %45 = sbr.rel (0) target = $region17
    $region16: #{tpu_custom_call.1} parent=1 // pred_region
      _
    $region17: #{tpu_custom_call.1} parent=1 // pred_fallthru
      _
    // Predicated region
    $region18: #{tpu_custom_call.1} parent=1 // pred_check
      _
    $region19: #{tpu_custom_call.1} parent=1 // pred_check_branch
      %47 = sbr.rel (0) target = $region21
    $region20: #{tpu_custom_call.1} parent=1 // pred_region
      %48 = dma.done [#allocation4], 16
    $region21: #{tpu_custom_call.1} parent=1 // pred_fallthru
      _
    // Predicated region
    $region22: #{tpu_custom_call.1} parent=1 // pred_check
      _
    $region23: #{tpu_custom_call.1} parent=1 // pred_check_branch
      %50 = sbr.rel (0) target = $region25
    $region24: #{tpu_custom_call.1} parent=1 // pred_region
      %51 = dma.done [#allocation3], 1024
    $region25: #{tpu_custom_call.1} parent=1 // pred_fallthru
      _
    // Predicated region
    $region26: #{tpu_custom_call.1} parent=1 // pred_check
      _
    $region27: #{tpu_custom_call.1} parent=1 // pred_check_branch
      %53 = sbr.rel (0) target = $region29
    $region28: #{tpu_custom_call.1} parent=1 // pred_region
      %54 = dma.done [#allocation7], 4096
    $region29: #{tpu_custom_call.1} parent=1 // pred_fallthru
      _
    %55 = sfence
    %s56 = sld [smem:[#allocation2]]
    %s57 = sld [smem:[#allocation2 + $0x1]]
    %s58 = sld [smem:[#allocation2 + $0x2]]
    %s59 = sld [smem:[#allocation2 + $0x3]]
    %s60 = sld [smem:[#allocation2 + $0x4]]
    %s61 = sld [smem:[#allocation2 + $0x5]]
    %v62 = vld [vmem:[#allocation5] sm:$0xf]
    %v63 = vld [vmem:[#allocation5 + $0x10] sm:$0xf]
    %v64 = vld [vmem:[#allocation5 + $0x20] sm:$0xf]
    %v65 = vld [vmem:[#allocation5 + $0x30] sm:$0xf]
    %v66 = vstv %s56
    %v67 = vmul.f32 %v62, %v66
    %v68 = vmul.f32 %v63, %v66
    %v69 = vmul.f32 %v64, %v66
    %v70 = vmul.f32 %v65, %v66
    %v71 = vld [vmem:[#allocation5 + $0x4] sm:$0xf]
    %v72 = vld [vmem:[#allocation5 + $0x14] sm:$0xf]
    %v73 = vld [vmem:[#allocation5 + $0x24] sm:$0xf]
    %v74 = vld [vmem:[#allocation5 + $0x34] sm:$0xf]
    %v75 = vstv %s57
    %v76 = vmul.f32 %v71, %v75
    %v77 = vmul.f32 %v72, %v75
    %v78 = vmul.f32 %v73, %v75
    %v79 = vmul.f32 %v74, %v75
    %v80 = vadd.f32 %v67, %v76
    %v81 = vadd.f32 %v68, %v77
    %v82 = vadd.f32 %v69, %v78
    %v83 = vadd.f32 %v70, %v79
    %v84 = vld [vmem:[#allocation5 + $0x8] sm:$0xf]
    %v85 = vld [vmem:[#allocation5 + $0x18] sm:$0xf]
    %v86 = vld [vmem:[#allocation5 + $0x28] sm:$0xf]
    %v87 = vld [vmem:[#allocation5 + $0x38] sm:$0xf]
    %v88 = vstv %s58
    %v89 = vmul.f32 %v84, %v88
    %v90 = vmul.f32 %v85, %v88
    %v91 = vmul.f32 %v86, %v88
    %v92 = vmul.f32 %v87, %v88
    %v93 = vadd.f32 %v80, %v89
    %v94 = vadd.f32 %v81, %v90
    %v95 = vadd.f32 %v82, %v91
    %v96 = vadd.f32 %v83, %v92
    %v97 = vld [vmem:[#allocation5 + $0xc] sm:$0xf]
    %v98 = vld [vmem:[#allocation5 + $0x1c] sm:$0xf]
    %v99 = vld [vmem:[#allocation5 + $0x2c] sm:$0xf]
    %v100 = vld [vmem:[#allocation5 + $0x3c] sm:$0xf]
    %v101 = vstv %s59
    %v102 = vmul.f32 %v97, %v101
    %v103 = vmul.f32 %v98, %v101
    %v104 = vmul.f32 %v99, %v101
    %v105 = vmul.f32 %v100, %v101
    %v106 = vadd.f32 %v93, %v102
    %v107 = vadd.f32 %v94, %v103
    %v108 = vadd.f32 %v95, %v104
    %v109 = vadd.f32 %v96, %v105
    %v110 = vstv %s60
    %v111 = vadd.f32 %v106, %v110
    %v112 = vadd.f32 %v107, %v110
    %v113 = vadd.f32 %v108, %v110
    %v114 = vadd.f32 %v109, %v110
    %v115 = vmax.f32 %v111, 0.0
    %v116 = vmax.f32 %v112, 0.0
    %v117 = vmax.f32 %v113, 0.0
    %v118 = vmax.f32 %v114, 0.0
    %v119 = vld [vmem:[#allocation6] sm:$0xff]
    %v120 = vld [vmem:[#allocation6 + $0x8] sm:$0xff]
    %v121 = vld [vmem:[#allocation6 + $0x10] sm:$0xff]
    %v122 = vld [vmem:[#allocation6 + $0x18] sm:$0xff]
    %v123 = vld [vmem:[#allocation6 + $0x20] sm:$0xff]
    %v124 = vld [vmem:[#allocation6 + $0x28] sm:$0xff]
    %v125 = vld [vmem:[#allocation6 + $0x30] sm:$0xff]
    %v126 = vld [vmem:[#allocation6 + $0x38] sm:$0xff]
    %v127 = vld [vmem:[#allocation6 + $0x40] sm:$0xff]
    %v128 = vld [vmem:[#allocation6 + $0x48] sm:$0xff]
    %v129 = vld [vmem:[#allocation6 + $0x50] sm:$0xff]
    %v130 = vld [vmem:[#allocation6 + $0x58] sm:$0xff]
    %v131 = vld [vmem:[#allocation6 + $0x60] sm:$0xff]
    %v132 = vld [vmem:[#allocation6 + $0x68] sm:$0xff]
    %v133 = vld [vmem:[#allocation6 + $0x70] sm:$0xff]
    %v134 = vld [vmem:[#allocation6 + $0x78] sm:$0xff]
    %v135 = vld [vmem:[#allocation6 + $0x80] sm:$0xff]
    %v136 = vld [vmem:[#allocation6 + $0x88] sm:$0xff]
    %v137 = vld [vmem:[#allocation6 + $0x90] sm:$0xff]
    %v138 = vld [vmem:[#allocation6 + $0x98] sm:$0xff]
    %v139 = vld [vmem:[#allocation6 + $0xa0] sm:$0xff]
    %v140 = vld [vmem:[#allocation6 + $0xa8] sm:$0xff]
    %v141 = vld [vmem:[#allocation6 + $0xb0] sm:$0xff]
    %v142 = vld [vmem:[#allocation6 + $0xb8] sm:$0xff]
    %v143 = vld [vmem:[#allocation6 + $0xc0] sm:$0xff]
    %v144 = vld [vmem:[#allocation6 + $0xc8] sm:$0xff]
    %v145 = vld [vmem:[#allocation6 + $0xd0] sm:$0xff]
    %v146 = vld [vmem:[#allocation6 + $0xd8] sm:$0xff]
    %v147 = vld [vmem:[#allocation6 + $0xe0] sm:$0xff]
    %v148 = vld [vmem:[#allocation6 + $0xe8] sm:$0xff]
    %v149 = vld [vmem:[#allocation6 + $0xf0] sm:$0xff]
    %v150 = vld [vmem:[#allocation6 + $0xf8] sm:$0xff]
    %v151 = vld [vmem:[%s3] sm:$0x1]
    %v152 = vlaneseq
    %v153 = vshrl.u32 %v152, 7
    %v154 = vsub.s32 0, %v153
    %v155 = vrot.slane %v151, %v154
    %v160 = vcombine.low %v115, %v116
    %v161 = vcombine.low %v117, %v118
    %v163 = vunpack.c.l.s4 1983009808
    %v164 = vunpack.c.0.s8 %v163
    %v165 = vlaneseq
    %v166 = vshrl.u32 %v165, 7
    %v167 = vsub.s32 %v164, %v166
    %v168 = vrot.slane %v160, %v167
    %v170 = vunpack.c.l.s4 1983009808
    %v171 = vunpack.c.0.s8 %v170
    %v172 = vlaneseq
    %v173 = vshrl.u32 %v172, 7
    %v174 = vsub.s32 %v171, %v173
    %v175 = vrot.slane %v161, %v174
    %v176 = vcombine.low %v168, %v175
    %v177 = vcombine.high %v168, %v175
    %180 = vmatprep.subr.mxu0 0.0
    %181 = vmatpush1.msra.mxu0 %v119
    %182 = vmatprep.subr.mxu0 0.0
    %183 = vmatpush1.msra.mxu0 %v120
    %184 = vmatprep.subr.mxu0 0.0
    %185 = vmatpush1.msra.mxu0 %v121
    %186 = vmatprep.subr.mxu0 0.0
    %187 = vmatpush1.msra.mxu0 %v122
    %188 = vmatprep.subr.mxu0 0.0
    %189 = vmatpush1.msra.mxu0 %v123
    %190 = vmatprep.subr.mxu0 0.0
    %191 = vmatpush1.msra.mxu0 %v124
    %192 = vmatprep.subr.mxu0 0.0
    %193 = vmatpush1.msra.mxu0 %v125
    %194 = vmatprep.subr.mxu0 0.0
    %195 = vmatpush1.msra.mxu0 %v126
    %196 = vmatprep.subr.mxu0 0.0
    %197 = vmatpush1.msra.mxu0 %v127
    %198 = vmatprep.subr.mxu0 0.0
    %199 = vmatpush1.msra.mxu0 %v128
    %200 = vmatprep.subr.mxu0 0.0
    %201 = vmatpush1.msra.mxu0 %v129
    %202 = vmatprep.subr.mxu0 0.0
    %203 = vmatpush1.msra.mxu0 %v130
    %204 = vmatprep.subr.mxu0 0.0
    %205 = vmatpush1.msra.mxu0 %v131
    %206 = vmatprep.subr.mxu0 0.0
    %207 = vmatpush1.msra.mxu0 %v132
    %208 = vmatprep.subr.mxu0 0.0
    %209 = vmatpush1.msra.mxu0 %v133
    %210 = vmatprep.subr.mxu0 0.0
    %211 = vmatpush1.msra.mxu0 %v134
    %212 = vmatprep.subr.mxu0 0.0
    %213 = vmatpush1.msra.mxu0 %v135
    %214 = vmatprep.subr.mxu0 0.0
    %215 = vmatpush1.msra.mxu0 %v136
    %216 = vmatprep.subr.mxu0 0.0
    %217 = vmatpush1.msra.mxu0 %v137
    %218 = vmatprep.subr.mxu0 0.0
    %219 = vmatpush1.msra.mxu0 %v138
    %220 = vmatprep.subr.mxu0 0.0
    %221 = vmatpush1.msra.mxu0 %v139
    %222 = vmatprep.subr.mxu0 0.0
    %223 = vmatpush1.msra.mxu0 %v140
    %224 = vmatprep.subr.mxu0 0.0
    %225 = vmatpush1.msra.mxu0 %v141
    %226 = vmatprep.subr.mxu0 0.0
    %227 = vmatpush1.msra.mxu0 %v142
    %228 = vmatprep.subr.mxu0 0.0
    %229 = vmatpush1.msra.mxu0 %v143
    %230 = vmatprep.subr.mxu0 0.0
    %231 = vmatpush1.msra.mxu0 %v144
    %232 = vmatprep.subr.mxu0 0.0
    %233 = vmatpush1.msra.mxu0 %v145
    %234 = vmatprep.subr.mxu0 0.0
    %235 = vmatpush1.msra.mxu0 %v146
    %236 = vmatprep.subr.mxu0 0.0
    %237 = vmatpush1.msra.mxu0 %v147
    %238 = vmatprep.subr.mxu0 0.0
    %239 = vmatpush1.msra.mxu0 %v148
    %240 = vmatprep.subr.mxu0 0.0
    %241 = vmatpush1.msra.mxu0 %v149
    %242 = vmatprep.subr.mxu0 0.0
    %243 = vmatpush1.msra.mxu0 %v150
    %244 = vmatprep.mubr.f32.mxu0 %v177
    %245 = vmatmul.mubr.f32.gmra.mrb[0].mxu0 %v176
    %v246 = vpop.f32.mrb[0].mxu0
    %v247 = vadd.f32 %v155, %v246
    %v248 = vpop.f32.mrb[0].mxu0
    %249 = vdwg.mxu0
    %v250 = vmax.f32 %v247, 0.0
    %v251 = vld [vmem:[%s3 + $0x1] sm:$0x1]
    %v252 = vlaneseq
    %v253 = vshrl.u32 %v252, 7
    %v254 = vsub.s32 0, %v253
    %v255 = vrot.slane %v251, %v254
    %v256 = vmul.f32 %v250, %v255
    %257 = vadd.xlane.f32.xlu0 %v256
    %v258 = vpop.xlane.xlu0 %257
    %v259 = vstv %s61
    %v260 = vadd.f32 %v258, %v259
    %v261 = vtanh.pop %v260
    %vm262 = vcmask 7168
    %263 = vst.msk [vmem:[%s4] sm:$0xff] %vm262, %v261
    // Predicated region
    $region30: #{tpu_custom_call.1} parent=1 // pred_check
      _
    $region31: #{tpu_custom_call.1} parent=1 // pred_check_branch
      %265 = sbr.rel (0) target = $region33
    $region32: #{tpu_custom_call.1} parent=1 // pred_region
      _
    $region33: #{tpu_custom_call.1} parent=1 // pred_fallthru
      _
    // Predicated region
    $region34: #{tpu_custom_call.1} parent=1 // pred_check
      _
    $region35: #{tpu_custom_call.1} parent=1 // pred_check_branch
      %267 = sbr.rel (0) target = $region37
    $region36: #{tpu_custom_call.1} parent=1 // pred_region
      _
    $region37: #{tpu_custom_call.1} parent=1 // pred_fallthru
      _
    %268 = vsyncpa [#allocation3], 1
    %269 = vsyncpa [#allocation7], 1
    %270 = vsyncpa [#allocation4], 1

</llo_original>
